<compile_context>
chip_gen: v6e
topology: v6e:2x2x1
jax: 0.10.0
libtpu: 0.0.40
codegen_flags: <defaults>
</compile_context>

<pallas_src>
import jax
import jax.numpy as jnp
from jax import lax
from jax.experimental import pallas as pl
from jax.experimental.pallas import tpu as pltpu


def _round_up(n, m):
    return ((n + m - 1) // m) * m


def _pick_batch_tiling(B, max_tile=4096):
    """Choose (tile_b, padded_B, n_tiles).

    - tile_b is a multiple of 128 (batch lives on the lane axis of the output).
    - at least 2 tiles whenever the 128-padded batch allows it, so the "parallel"
      grid axis can shard across the 2 TensorCores on v7x.
    - capped at `max_tile` lanes: amortizes the ~0.35us/grid-step overhead while
      keeping the (3H, TILE_B) f32 gate intermediates + double-buffered x tiles
      comfortably inside even v7x's 64 MiB VMEM.
    """
    Bp128 = _round_up(max(B, 1), 128)
    min_tiles = 2 if Bp128 >= 256 else 1
    n_tiles = max(min_tiles, pl.cdiv(Bp128, max_tile))
    tb = _round_up(pl.cdiv(Bp128, n_tiles), 128)
    n_tiles = pl.cdiv(Bp128, tb)
    return tb, tb * n_tiles, n_tiles


def _lstm_head_kernel(x_ref,
                      wih0_ref, b0_ref,
                      wih1_ref, b1_ref,
                      wlin_ref, blin_ref,
                      out_ref):
    """Layouts:
      x_ref    : (TILE_B, D)   untransposed batch tile (exactly as stored in HBM)
      wih{0,1} : (3H, K)       rows ordered [i, g, o] (forget gate dropped: c0 == 0)
      b{0,1}   : (3H, 1)       fused b_ih + b_hh for the [i, g, o] rows (f32)
      wlin     : (H, 1)        linear head weights as a column (f32)
      blin     : (1, 1)
      out_ref  : (1, TILE_B)   lane-dense output row
    """
    H = wih1_ref.shape[1]                      # hidden_dim

    def gate_act(gates):
        # sigmoid(z) == 0.5 * tanh(0.5 * z) + 0.5 : one EUP op per sigmoid instead
        # of two (exp + reciprocal); the extra mul/add ride the under-utilized VPU.
        i_ = 0.5 * jnp.tanh(0.5 * gates[0 * H:1 * H, :]) + 0.5
        g_ = jnp.tanh(gates[1 * H:2 * H, :])
        o_ = 0.5 * jnp.tanh(0.5 * gates[2 * H:3 * H, :]) + 0.5
        # c = i*g (f * c_prev == 0), h = o * tanh(c)
        return o_ * jnp.tanh(i_ * g_)          # (H, TILE_B) f32

    w0 = wih0_ref[...]
    x = x_ref[...].astype(w0.dtype)
    # gates1^T = W_ih0 @ x^T : NT contraction on D of both operands, so no
    # host-side pad+transpose of x is ever materialized.
    g1 = lax.dot_general(w0, x,
                         dimension_numbers=(((1,), (1,)), ((), ())),
                         preferred_element_type=jnp.float32) + b0_ref[...]
    h1 = gate_act(g1)                           # (H, TILE_B) f32

    w1 = wih1_ref[...]
    g2 = jnp.dot(w1, h1.astype(w1.dtype),
                 preferred_element_type=jnp.float32) + b1_ref[...]
    h2 = gate_act(g2)                           # (H, TILE_B) f32

    # Linear(H, 1) head: VPU multiply + cross-sublane reduce (no N=1/M=1 MXU call).
    out_ref[...] = jnp.sum(h2 * wlin_ref[...], axis=0, keepdims=True) + blin_ref[...]


def lstm_forward(x, kparams, max_tile=4096):
    """x: (batch, input_dim) f32. Returns (batch,) f32 — matches y_pred.view(-1).

    Specialized to the module's forward: seq_len == 1 and zero (h0, c0).
    """
    B, D = x.shape
    tb, Bp, n_tiles = _pick_batch_tiling(B, max_tile)
    xp = x if Bp == B else jnp.pad(x, ((0, Bp - B), (0, 0)))   # batch-only pad

    const = lambda i: (0, 0)                    # weights resident across grid steps
    out = pl.pallas_call(
        _lstm_head_kernel,
        out_shape=jax.ShapeDtypeStruct((1, Bp), jnp.float32),
        grid=(n_tiles,),
        in_specs=[
            pl.BlockSpec((tb, D), lambda i: (i, 0)),           # untransposed x tile
            pl.BlockSpec(kparams["wih0"].shape, const),
            pl.BlockSpec(kparams["b0"].shape, const),
            pl.BlockSpec(kparams["wih1"].shape, const),
            pl.BlockSpec(kparams["b1"].shape, const),
            pl.BlockSpec(kparams["wlin_col"].shape, const),
            pl.BlockSpec(kparams["blin"].shape, const),
        ],
        out_specs=pl.BlockSpec((1, tb), lambda i: (0, i)),     # lane-dense output row
        compiler_params=pltpu.CompilerParams(
            dimension_semantics=("parallel",),  # batch tiles independent (megacore/v7x)
            vmem_limit_bytes=32 * 1024 * 1024,  # few-MiB footprint; safe on v5e/v6e/v7x
        ),
    )(xp, kparams["wih0"], kparams["b0"],
      kparams["wih1"], kparams["b1"],
      kparams["wlin_col"], kparams["blin"])

    return out[0, :B]


# ----------------------------------------------------------------------------
# Parameter construction (PyTorch-style) and packing for the kernel.
# ----------------------------------------------------------------------------

def init_torch_params(key, input_dim, hidden_dim):
    """PyTorch-layout params with uniform(-1/sqrt(H), 1/sqrt(H)) init."""
    H = hidden_dim
    bound = 1.0 / (H ** 0.5)
    keys = jax.random.split(key, 10)

    def u(k, shape):
        return jax.random.uniform(k, shape, jnp.float32, -bound, bound)

    return {
        "w_ih_l0": u(keys[0], (4 * H, input_dim)),
        "w_hh_l0": u(keys[1], (4 * H, H)),
        "b_ih_l0": u(keys[2], (4 * H,)),
        "b_hh_l0": u(keys[3], (4 * H,)),
        "w_ih_l1": u(keys[4], (4 * H, H)),
        "w_hh_l1": u(keys[5], (4 * H, H)),
        "b_ih_l1": u(keys[6], (4 * H,)),
        "b_hh_l1": u(keys[7], (4 * H,)),
        "w_lin":   u(keys[8], (1, H)),
        "b_lin":   u(keys[9], (1,)),
    }


def pack_kernel_params(tp, hidden_dim, mxu_dtype=jnp.float32):
    """Drop W_hh (h0 == 0) and the forget gate (c0 == 0); fuse biases.

    Gate row order inside the kernel: [i, g, o]. `mxu_dtype` selects the MXU feed
    dtype for the two matmul weights (f32 or bf16); biases/head stay f32 and
    accumulation is always f32.
    """
    H = hidden_dim

    def igo_rows(w4):                      # (4H, K) -> (3H, K)
        return jnp.concatenate(
            [w4[0 * H:1 * H], w4[2 * H:3 * H], w4[3 * H:4 * H]], axis=0
        ).astype(mxu_dtype)

    def igo_bias(b_ih, b_hh):              # -> (3H, 1) f32
        b = b_ih + b_hh
        return jnp.concatenate(
            [b[0 * H:1 * H], b[2 * H:3 * H], b[3 * H:4 * H]], axis=0
        ).reshape(3 * H, 1).astype(jnp.float32)

    return {
        "wih0": igo_rows(tp["w_ih_l0"]),                       # (3H, input_dim)
        "b0":   igo_bias(tp["b_ih_l0"], tp["b_hh_l0"]),        # (3H, 1)
        "wih1": igo_rows(tp["w_ih_l1"]),                       # (3H, H)
        "b1":   igo_bias(tp["b_ih_l1"], tp["b_hh_l1"]),        # (3H, 1)
        "wlin_col": tp["w_lin"].reshape(H, 1).astype(jnp.float32),  # (H, 1)
        "blin": tp["b_lin"].reshape(1, 1).astype(jnp.float32),      # (1, 1)
    }


def _reference(x, tp, hidden_dim):
    """Full (un-simplified) pure-JAX LSTM forward for correctness checking."""
    H = hidden_dim
    B = x.shape[0]
    h0 = jnp.zeros((B, H), jnp.float32)
    c0 = jnp.zeros((B, H), jnp.float32)

    def cell(inp, w_ih, w_hh, b_ih, b_hh, h_prev, c_prev):
        gates = inp @ w_ih.T + b_ih + h_prev @ w_hh.T + b_hh
        i = jax.nn.sigmoid(gates[:, 0 * H:1 * H])
        f = jax.nn.sigmoid(gates[:, 1 * H:2 * H])
        g = jnp.tanh(gates[:, 2 * H:3 * H])
        o = jax.nn.sigmoid(gates[:, 3 * H:4 * H])
        c = f * c_prev + i * g
        h = o * jnp.tanh(c)
        return h, c

    h1, _ = cell(x, tp["w_ih_l0"], tp["w_hh_l0"], tp["b_ih_l0"], tp["b_hh_l0"], h0, c0)
    h2, _ = cell(h1, tp["w_ih_l1"], tp["w_hh_l1"], tp["b_ih_l1"], tp["b_hh_l1"], h0, c0)
    return (h2 @ tp["w_lin"].T + tp["b_lin"]).reshape(-1)


if __name__ == "__main__":
    input_dim, hidden_dim, batch_size = 16, 32, 2

    key = jax.random.PRNGKey(0)
    k_x, k_p, k_x2 = jax.random.split(key, 3)

    torch_params = init_torch_params(k_p, input_dim, hidden_dim)
    kp_f32 = pack_kernel_params(torch_params, hidden_dim, mxu_dtype=jnp.float32)
    kp_bf16 = pack_kernel_params(torch_params, hidden_dim, mxu_dtype=jnp.bfloat16)

    fwd = jax.jit(lstm_forward)

    # Small shape matching the module's intended usage (batch=2).
    x = jax.random.normal(k_x, (batch_size, input_dim), jnp.float32)
    y = jax.block_until_ready(fwd(x, kp_f32))
    y_ref = _reference(x, torch_params, hidden_dim)
    assert y.shape == (batch_size,)
    assert jnp.allclose(y, y_ref, atol=2e-5, rtol=1e-5), float(jnp.max(jnp.abs(y - y_ref)))

    # Larger batch exercising the multi-tile grid, padding, and lane-dense stores.
    xb = jax.random.normal(k_x2, (700, input_dim), jnp.float32)
    yb = jax.block_until_ready(fwd(xb, kp_f32))
    yb_ref = _reference(xb, torch_params, hidden_dim)
    assert yb.shape == (700,)
    assert jnp.allclose(yb, yb_ref, atol=2e-5, rtol=1e-5), float(jnp.max(jnp.abs(yb - yb_ref)))

    # bf16 MXU-feed variant (native MXU dtype on v5e/v6e/v7x); looser tolerance.
    yb16 = jax.block_until_ready(fwd(xb, kp_bf16))
    assert jnp.allclose(yb16, yb_ref, atol=2e-2, rtol=2e-2), float(jnp.max(jnp.abs(yb16 - yb_ref)))

    print("KERNEL_OK")
</pallas_src>

<mosaic_0001>
module attributes {stable_mosaic.version = 11 : i64} {
  func.func @_lstm_head_kernel(%arg0: i32, %arg1: memref<128x16xf32, #tpu.memory_space<vmem>>, %arg2: memref<96x16xf32, #tpu.memory_space<vmem>>, %arg3: memref<96x1xf32, #tpu.memory_space<vmem>>, %arg4: memref<96x32xf32, #tpu.memory_space<vmem>>, %arg5: memref<96x1xf32, #tpu.memory_space<vmem>>, %arg6: memref<32x1xf32, #tpu.memory_space<vmem>>, %arg7: memref<1x1xf32, #tpu.memory_space<vmem>>, %arg8: memref<1x128xf32, #tpu.memory_space<vmem>>) attributes {dimension_semantics = [#tpu.dimension_semantics<parallel>], iteration_bounds = array<i64: 1>, scalar_prefetch = 0 : i64, scratch_operands = 0 : i64, tpu.core_type = #tpu.core_type<tc>, window_params = [{transform_indices = @transform_0, window_bounds = array<i64: 128, 16>}, {pipeline_mode = #tpu.pipeline_mode<synchronous>, transform_indices = @transform_1, window_bounds = array<i64: 96, 16>}, {pipeline_mode = #tpu.pipeline_mode<synchronous>, transform_indices = @transform_2, window_bounds = array<i64: 96, 1>}, {pipeline_mode = #tpu.pipeline_mode<synchronous>, transform_indices = @transform_3, window_bounds = array<i64: 96, 32>}, {pipeline_mode = #tpu.pipeline_mode<synchronous>, transform_indices = @transform_4, window_bounds = array<i64: 96, 1>}, {pipeline_mode = #tpu.pipeline_mode<synchronous>, transform_indices = @transform_5, window_bounds = array<i64: 32, 1>}, {pipeline_mode = #tpu.pipeline_mode<synchronous>, transform_indices = @transform_6, window_bounds = array<i64: 1, 1>}, {transform_indices = @transform_7, window_bounds = array<i64: 1, 128>}]} {
    %c0 = arith.constant 0 : index
    %c0_0 = arith.constant 0 : index
    %0 = vector.load %arg2[%c0, %c0_0] : memref<96x16xf32, #tpu.memory_space<vmem>>, vector<96x16xf32>
    %c0_1 = arith.constant 0 : index
    %c0_2 = arith.constant 0 : index
    %1 = vector.load %arg1[%c0_1, %c0_2] : memref<128x16xf32, #tpu.memory_space<vmem>>, vector<128x16xf32>
    %cst = arith.constant dense<0.000000e+00> : vector<96x128xf32>
    %2 = tpu.matmul %0, %1, %cst {dimension_numbers = #tpu.dot_dimension_numbers<[1], [1], [0], [0], [0, 0, 1, 0], [], []>} : vector<96x16xf32>, vector<128x16xf32>, vector<96x128xf32> -> vector<96x128xf32>
    %c0_3 = arith.constant 0 : index
    %c0_4 = arith.constant 0 : index
    %3 = vector.load %arg3[%c0_3, %c0_4] : memref<96x1xf32, #tpu.memory_space<vmem>>, vector<96x1xf32>
    %4 = vector.broadcast %3 : vector<96x1xf32> to vector<96x128xf32>
    %5 = arith.addf %2, %4 : vector<96x128xf32>
    %6 = vector.extract_strided_slice %5 {offsets = [0, 0], sizes = [32, 128], strides = [1, 1]} : vector<96x128xf32> to vector<32x128xf32>
    %cst_5 = arith.constant 5.000000e-01 : f32
    %7 = vector.broadcast %cst_5 : f32 to vector<32x128xf32>
    %8 = arith.mulf %7, %6 : vector<32x128xf32>
    %9 = math.tanh %8 : vector<32x128xf32>
    %cst_6 = arith.constant 5.000000e-01 : f32
    %10 = vector.broadcast %cst_6 : f32 to vector<32x128xf32>
    %11 = arith.mulf %10, %9 : vector<32x128xf32>
    %cst_7 = arith.constant 5.000000e-01 : f32
    %12 = vector.broadcast %cst_7 : f32 to vector<32x128xf32>
    %13 = arith.addf %11, %12 : vector<32x128xf32>
    %14 = vector.extract_strided_slice %5 {offsets = [32, 0], sizes = [32, 128], strides = [1, 1]} : vector<96x128xf32> to vector<32x128xf32>
    %15 = math.tanh %14 : vector<32x128xf32>
    %16 = vector.extract_strided_slice %5 {offsets = [64, 0], sizes = [32, 128], strides = [1, 1]} : vector<96x128xf32> to vector<32x128xf32>
    %cst_8 = arith.constant 5.000000e-01 : f32
    %17 = vector.broadcast %cst_8 : f32 to vector<32x128xf32>
    %18 = arith.mulf %17, %16 : vector<32x128xf32>
    %19 = math.tanh %18 : vector<32x128xf32>
    %cst_9 = arith.constant 5.000000e-01 : f32
    %20 = vector.broadcast %cst_9 : f32 to vector<32x128xf32>
    %21 = arith.mulf %20, %19 : vector<32x128xf32>
    %cst_10 = arith.constant 5.000000e-01 : f32
    %22 = vector.broadcast %cst_10 : f32 to vector<32x128xf32>
    %23 = arith.addf %21, %22 : vector<32x128xf32>
    %24 = arith.mulf %13, %15 : vector<32x128xf32>
    %25 = math.tanh %24 : vector<32x128xf32>
    %26 = arith.mulf %23, %25 : vector<32x128xf32>
    %c0_11 = arith.constant 0 : index
    %c0_12 = arith.constant 0 : index
    %27 = vector.load %arg4[%c0_11, %c0_12] : memref<96x32xf32, #tpu.memory_space<vmem>>, vector<96x32xf32>
    %cst_13 = arith.constant dense<0.000000e+00> : vector<96x128xf32>
    %28 = tpu.matmul %27, %26, %cst_13 {dimension_numbers = #tpu.dot_dimension_numbers<[1], [0], [0], [1], [0, 0, 1, 1], [], []>} : vector<96x32xf32>, vector<32x128xf32>, vector<96x128xf32> -> vector<96x128xf32>
    %c0_14 = arith.constant 0 : index
    %c0_15 = arith.constant 0 : index
    %29 = vector.load %arg5[%c0_14, %c0_15] : memref<96x1xf32, #tpu.memory_space<vmem>>, vector<96x1xf32>
    %30 = vector.broadcast %29 : vector<96x1xf32> to vector<96x128xf32>
    %31 = arith.addf %28, %30 : vector<96x128xf32>
    %32 = vector.extract_strided_slice %31 {offsets = [0, 0], sizes = [32, 128], strides = [1, 1]} : vector<96x128xf32> to vector<32x128xf32>
    %cst_16 = arith.constant 5.000000e-01 : f32
    %33 = vector.broadcast %cst_16 : f32 to vector<32x128xf32>
    %34 = arith.mulf %33, %32 : vector<32x128xf32>
    %35 = math.tanh %34 : vector<32x128xf32>
    %cst_17 = arith.constant 5.000000e-01 : f32
    %36 = vector.broadcast %cst_17 : f32 to vector<32x128xf32>
    %37 = arith.mulf %36, %35 : vector<32x128xf32>
    %cst_18 = arith.constant 5.000000e-01 : f32
    %38 = vector.broadcast %cst_18 : f32 to vector<32x128xf32>
    %39 = arith.addf %37, %38 : vector<32x128xf32>
    %40 = vector.extract_strided_slice %31 {offsets = [32, 0], sizes = [32, 128], strides = [1, 1]} : vector<96x128xf32> to vector<32x128xf32>
    %41 = math.tanh %40 : vector<32x128xf32>
    %42 = vector.extract_strided_slice %31 {offsets = [64, 0], sizes = [32, 128], strides = [1, 1]} : vector<96x128xf32> to vector<32x128xf32>
    %cst_19 = arith.constant 5.000000e-01 : f32
    %43 = vector.broadcast %cst_19 : f32 to vector<32x128xf32>
    %44 = arith.mulf %43, %42 : vector<32x128xf32>
    %45 = math.tanh %44 : vector<32x128xf32>
    %cst_20 = arith.constant 5.000000e-01 : f32
    %46 = vector.broadcast %cst_20 : f32 to vector<32x128xf32>
    %47 = arith.mulf %46, %45 : vector<32x128xf32>
    %cst_21 = arith.constant 5.000000e-01 : f32
    %48 = vector.broadcast %cst_21 : f32 to vector<32x128xf32>
    %49 = arith.addf %47, %48 : vector<32x128xf32>
    %50 = arith.mulf %39, %41 : vector<32x128xf32>
    %51 = math.tanh %50 : vector<32x128xf32>
    %52 = arith.mulf %49, %51 : vector<32x128xf32>
    %c0_22 = arith.constant 0 : index
    %c0_23 = arith.constant 0 : index
    %53 = vector.load %arg6[%c0_22, %c0_23] : memref<32x1xf32, #tpu.memory_space<vmem>>, vector<32x1xf32>
    %54 = vector.broadcast %53 : vector<32x1xf32> to vector<32x128xf32>
    %55 = arith.mulf %52, %54 : vector<32x128xf32>
    %cst_24 = arith.constant dense<0.000000e+00> : vector<128xf32>
    %56 = vector.multi_reduction <add>, %55, %cst_24 [0] : vector<32x128xf32> to vector<128xf32>
    %57 = vector.shape_cast %56 : vector<128xf32> to vector<1x128xf32>
    %c0_25 = arith.constant 0 : index
    %c0_26 = arith.constant 0 : index
    %58 = vector.load %arg7[%c0_25, %c0_26] : memref<1x1xf32, #tpu.memory_space<vmem>>, vector<1x1xf32>
    %59 = vector.broadcast %58 : vector<1x1xf32> to vector<1x128xf32>
    %60 = arith.addf %57, %59 : vector<1x128xf32>
    %c0_27 = arith.constant 0 : index
    %c0_28 = arith.constant 0 : index
    %61 = vector.load %arg8[%c0_27, %c0_28] : memref<1x128xf32, #tpu.memory_space<vmem>>, vector<1x128xf32>
    tpu.vector_store %arg8[%c0_27, %c0_28], %60 {strides = array<i32>} : memref<1x128xf32, #tpu.memory_space<vmem>>, vector<1x128xf32>,
    return
  }
  func.func @transform_0(%arg0: i32) -> (i32, i32) {
    %c0_i32 = arith.constant 0 : i32
    %c0_i32_0 = arith.constant 0 : i32
    return %arg0, %c0_i32 : i32, i32
  }
  func.func @transform_1(%arg0: i32) -> (i32, i32) {
    %c0_i32 = arith.constant 0 : i32
    %c0_i32_0 = arith.constant 0 : i32
    %c0_i32_1 = arith.constant 0 : i32
    return %c0_i32, %c0_i32_0 : i32, i32
  }
  func.func @transform_2(%arg0: i32) -> (i32, i32) {
    %c0_i32 = arith.constant 0 : i32
    %c0_i32_0 = arith.constant 0 : i32
    %c0_i32_1 = arith.constant 0 : i32
    return %c0_i32, %c0_i32_0 : i32, i32
  }
  func.func @transform_3(%arg0: i32) -> (i32, i32) {
    %c0_i32 = arith.constant 0 : i32
    %c0_i32_0 = arith.constant 0 : i32
    %c0_i32_1 = arith.constant 0 : i32
    return %c0_i32, %c0_i32_0 : i32, i32
  }
  func.func @transform_4(%arg0: i32) -> (i32, i32) {
    %c0_i32 = arith.constant 0 : i32
    %c0_i32_0 = arith.constant 0 : i32
    %c0_i32_1 = arith.constant 0 : i32
    return %c0_i32, %c0_i32_0 : i32, i32
  }
  func.func @transform_5(%arg0: i32) -> (i32, i32) {
    %c0_i32 = arith.constant 0 : i32
    %c0_i32_0 = arith.constant 0 : i32
    %c0_i32_1 = arith.constant 0 : i32
    return %c0_i32, %c0_i32_0 : i32, i32
  }
  func.func @transform_6(%arg0: i32) -> (i32, i32) {
    %c0_i32 = arith.constant 0 : i32
    %c0_i32_0 = arith.constant 0 : i32
    %c0_i32_1 = arith.constant 0 : i32
    return %c0_i32, %c0_i32_0 : i32, i32
  }
  func.func @transform_7(%arg0: i32) -> (i32, i32) {
    %c0_i32 = arith.constant 0 : i32
    %c0_i32_0 = arith.constant 0 : i32
    return %c0_i32, %arg0 : i32, i32
  }
}

</mosaic_0001>

<llo_original>
// kernel: lstm_forward.1
$region0: #{lstm_forward.1}
  #allocation0 [shape = 'u32[]', space=smem, size = 0x4, offset = 0x4, fixed_abs, tag = 'smem constant byte address 0x4 - core index']
  #allocation1 [shape = 'u32[144,128]{1,0:T(1,128)}', space=vmem, size = 0x12000, scoped, tag = 'internal scratch']
  #allocation2 [shape = 'f32[1,1]{1,0:T(1,128)S(1)}', space=vmem, size = 0x200, scoped, tag = 'scoped memory for lstm_forward.1']
  %s0 = inlined_call_operand.vmem [shape: f32[128,16], index: 0, kind: input, shape index: {}]
  %s1 = inlined_call_operand.vmem [shape: f32[96,16], index: 1, kind: input, shape index: {}]
  %s2 = inlined_call_operand.vmem [shape: f32[96,1], index: 2, kind: input, shape index: {}]
  %s3 = inlined_call_operand.vmem [shape: f32[96,32], index: 3, kind: input, shape index: {}]
  %s4 = inlined_call_operand.vmem [shape: f32[96,1], index: 4, kind: input, shape index: {}]
  %s5 = inlined_call_operand.vmem [shape: f32[32,1], index: 5, kind: input, shape index: {}]
  %s6 = inlined_call_operand.<no memory space> [shape: f32[1,1], index: 6, kind: input, shape index: {}]
  %s7 = inlined_call_operand.vmem [shape: f32[1,128], index: 7, kind: output, shape index: {}]
  %s8 = sld [smem:[#allocation0]]
  $region38: #{lstm_forward.1} parent=0
    _
  %s10 = ssub.s32 1, %s8
  %s11 = scalar_select 0, %s10, %s8
  %v12 = vstv %s6
  %13 = vst [vmem:[#allocation2] sm:$0x1] %v12
  // Predicated region
  $region2: #{lstm_forward.1} parent=0 // pred_check
    _
  $region3: #{lstm_forward.1} parent=0 // pred_check_branch
    %15 = sbr.rel (0) target = $region5
  $region4: #{lstm_forward.1} parent=0 // pred_region
    _
  $region5: #{lstm_forward.1} parent=0 // pred_fallthru
    _
  // Predicated region
  $region6: #{lstm_forward.1} parent=0 // pred_check
    _
  $region7: #{lstm_forward.1} parent=0 // pred_check_branch
    %17 = sbr.rel (0) target = $region9
  $region8: #{lstm_forward.1} parent=0 // pred_region
    _
  $region9: #{lstm_forward.1} parent=0 // pred_fallthru
    _
  // Predicated region
  $region10: #{lstm_forward.1} parent=0 // pred_check
    _
  $region11: #{lstm_forward.1} parent=0 // pred_check_branch
    %19 = sbr.rel (0) target = $region13
  $region12: #{lstm_forward.1} parent=0 // pred_region
    _
  $region13: #{lstm_forward.1} parent=0 // pred_fallthru
    _
  // Predicated region
  $region14: #{lstm_forward.1} parent=0 // pred_check
    _
  $region15: #{lstm_forward.1} parent=0 // pred_check_branch
    %21 = sbr.rel (0) target = $region17
  $region16: #{lstm_forward.1} parent=0 // pred_region
    _
  $region17: #{lstm_forward.1} parent=0 // pred_fallthru
    _
  // Predicated region
  $region18: #{lstm_forward.1} parent=0 // pred_check
    _
  $region19: #{lstm_forward.1} parent=0 // pred_check_branch
    %23 = sbr.rel (0) target = $region21
  $region20: #{lstm_forward.1} parent=0 // pred_region
    _
  $region21: #{lstm_forward.1} parent=0 // pred_fallthru
    _
  // Predicated region
  $region22: #{lstm_forward.1} parent=0 // pred_check
    _
  $region23: #{lstm_forward.1} parent=0 // pred_check_branch
    %25 = sbr.rel (0) target = $region25
  $region24: #{lstm_forward.1} parent=0 // pred_region
    _
  $region25: #{lstm_forward.1} parent=0 // pred_fallthru
    _
  // Predicated region
  $region26: #{lstm_forward.1} parent=0 // pred_check
    _
  $region27: #{lstm_forward.1} parent=0 // pred_check_branch
    %27 = sbr.rel (0) target = $region29
  $region28: #{lstm_forward.1} parent=0 // pred_region
    _
  $region29: #{lstm_forward.1} parent=0 // pred_fallthru
    _
  %v28 = vld [vmem:[%s1] sm:$0xff]
  %v29 = vld [vmem:[%s1 + $0x8] sm:$0xff]
  %v30 = vld [vmem:[%s1 + $0x10] sm:$0xff]
  %v31 = vld [vmem:[%s1 + $0x18] sm:$0xff]
  %v32 = vld [vmem:[%s1 + $0x20] sm:$0xff]
  %v33 = vld [vmem:[%s1 + $0x28] sm:$0xff]
  %v34 = vld [vmem:[%s1 + $0x30] sm:$0xff]
  %v35 = vld [vmem:[%s1 + $0x38] sm:$0xff]
  %v36 = vld [vmem:[%s1 + $0x40] sm:$0xff]
  %v37 = vld [vmem:[%s1 + $0x48] sm:$0xff]
  %v38 = vld [vmem:[%s1 + $0x50] sm:$0xff]
  %v39 = vld [vmem:[%s1 + $0x58] sm:$0xff]
  %v40 = vld [vmem:[%s0] sm:$0xff]
  %v41 = vld [vmem:[%s0 + $0x8] sm:$0xff]
  %v42 = vld [vmem:[%s0 + $0x10] sm:$0xff]
  %v43 = vld [vmem:[%s0 + $0x18] sm:$0xff]
  %v44 = vld [vmem:[%s0 + $0x20] sm:$0xff]
  %v45 = vld [vmem:[%s0 + $0x28] sm:$0xff]
  %v46 = vld [vmem:[%s0 + $0x30] sm:$0xff]
  %v47 = vld [vmem:[%s0 + $0x38] sm:$0xff]
  %v48 = vld [vmem:[%s0 + $0x40] sm:$0xff]
  %v49 = vld [vmem:[%s0 + $0x48] sm:$0xff]
  %v50 = vld [vmem:[%s0 + $0x50] sm:$0xff]
  %v51 = vld [vmem:[%s0 + $0x58] sm:$0xff]
  %v52 = vld [vmem:[%s0 + $0x60] sm:$0xff]
  %v53 = vld [vmem:[%s0 + $0x68] sm:$0xff]
  %v54 = vld [vmem:[%s0 + $0x70] sm:$0xff]
  %v55 = vld [vmem:[%s0 + $0x78] sm:$0xff]
  %v56 = vld [vmem:[%s2] sm:$0xff]
  %v57 = vld [vmem:[%s2 + $0x8] sm:$0xff]
  %v58 = vld [vmem:[%s2 + $0x10] sm:$0xff]
  %v59 = vld [vmem:[%s2 + $0x18] sm:$0xff]
  %v60 = vld [vmem:[%s2 + $0x20] sm:$0xff]
  %v61 = vld [vmem:[%s2 + $0x28] sm:$0xff]
  %v62 = vld [vmem:[%s2 + $0x30] sm:$0xff]
  %v63 = vld [vmem:[%s2 + $0x38] sm:$0xff]
  %v64 = vld [vmem:[%s2 + $0x40] sm:$0xff]
  %v65 = vld [vmem:[%s2 + $0x48] sm:$0xff]
  %v66 = vld [vmem:[%s2 + $0x50] sm:$0xff]
  %v67 = vld [vmem:[%s2 + $0x58] sm:$0xff]
  %69 = vset.pattern.permute.xlu0 0
  %70 = vperm.xlu0 %69, %v56
  %v71 = vpop.permute.xlu0 %70
  %74 = vset.pattern.permute.xlu0 0
  %75 = vperm.xlu0 %74, %v57
  %v76 = vpop.permute.xlu0 %75
  %79 = vset.pattern.permute.xlu0 0
  %80 = vperm.xlu0 %79, %v58
  %v81 = vpop.permute.xlu0 %80
  %84 = vset.pattern.permute.xlu0 0
  %85 = vperm.xlu0 %84, %v59
  %v86 = vpop.permute.xlu0 %85
  %89 = vset.pattern.permute.xlu0 0
  %90 = vperm.xlu0 %89, %v60
  %v91 = vpop.permute.xlu0 %90
  %94 = vset.pattern.permute.xlu0 0
  %95 = vperm.xlu0 %94, %v61
  %v96 = vpop.permute.xlu0 %95
  %99 = vset.pattern.permute.xlu0 0
  %100 = vperm.xlu0 %99, %v62
  %v101 = vpop.permute.xlu0 %100
  %104 = vset.pattern.permute.xlu0 0
  %105 = vperm.xlu0 %104, %v63
  %v106 = vpop.permute.xlu0 %105
  %109 = vset.pattern.permute.xlu0 0
  %110 = vperm.xlu0 %109, %v64
  %v111 = vpop.permute.xlu0 %110
  %114 = vset.pattern.permute.xlu0 0
  %115 = vperm.xlu0 %114, %v65
  %v116 = vpop.permute.xlu0 %115
  %119 = vset.pattern.permute.xlu0 0
  %120 = vperm.xlu0 %119, %v66
  %v121 = vpop.permute.xlu0 %120
  %124 = vset.pattern.permute.xlu0 0
  %125 = vperm.xlu0 %124, %v67
  %v126 = vpop.permute.xlu0 %125
  %vm128 = vcmask 130048
  %v130 = vsel %vm128, %v28, 0
  %v133 = vsel %vm128, %v29, 0
  %v136 = vsel %vm128, %v30, 0
  %v139 = vsel %vm128, %v31, 0
  %v142 = vsel %vm128, %v32, 0
  %v145 = vsel %vm128, %v33, 0
  %v148 = vsel %vm128, %v34, 0
  %v151 = vsel %vm128, %v35, 0
  %v154 = vsel %vm128, %v36, 0
  %v157 = vsel %vm128, %v37, 0
  %v160 = vsel %vm128, %v38, 0
  %v163 = vsel %vm128, %v39, 0
  %v166 = vsel %vm128, %v40, 0
  %v169 = vsel %vm128, %v41, 0
  %v172 = vsel %vm128, %v42, 0
  %v175 = vsel %vm128, %v43, 0
  %v178 = vsel %vm128, %v44, 0
  %v181 = vsel %vm128, %v45, 0
  %v184 = vsel %vm128, %v46, 0
  %v187 = vsel %vm128, %v47, 0
  %v190 = vsel %vm128, %v48, 0
  %v193 = vsel %vm128, %v49, 0
  %v196 = vsel %vm128, %v50, 0
  %v199 = vsel %vm128, %v51, 0
  %v202 = vsel %vm128, %v52, 0
  %v205 = vsel %vm128, %v53, 0
  %v208 = vsel %vm128, %v54, 0
  %v211 = vsel %vm128, %v55, 0
  %213 = vmatprep.subr.mxu0 0.0
  %214 = vmatpush1.xpose.msra.mxu0 %v211
  %215 = vmatprep.subr.mxu0 0.0
  %216 = vmatpush1.xpose.msra.mxu0 %v208
  %217 = vmatprep.subr.mxu0 0.0
  %218 = vmatpush1.xpose.msra.mxu0 %v205
  %219 = vmatprep.subr.mxu0 0.0
  %220 = vmatpush1.xpose.msra.mxu0 %v202
  %221 = vmatprep.subr.mxu0 0.0
  %222 = vmatpush1.xpose.msra.mxu0 %v199
  %223 = vmatprep.subr.mxu0 0.0
  %224 = vmatpush1.xpose.msra.mxu0 %v196
  %225 = vmatprep.subr.mxu0 0.0
  %226 = vmatpush1.xpose.msra.mxu0 %v193
  %227 = vmatprep.subr.mxu0 0.0
  %228 = vmatpush1.xpose.msra.mxu0 %v190
  %229 = vmatprep.subr.mxu0 0.0
  %230 = vmatpush1.xpose.msra.mxu0 %v187
  %231 = vmatprep.subr.mxu0 0.0
  %232 = vmatpush1.xpose.msra.mxu0 %v184
  %233 = vmatprep.subr.mxu0 0.0
  %234 = vmatpush1.xpose.msra.mxu0 %v181
  %235 = vmatprep.subr.mxu0 0.0
  %236 = vmatpush1.xpose.msra.mxu0 %v178
  %237 = vmatprep.subr.mxu0 0.0
  %238 = vmatpush1.xpose.msra.mxu0 %v175
  %239 = vmatprep.subr.mxu0 0.0
  %240 = vmatpush1.xpose.msra.mxu0 %v172
  %241 = vmatprep.subr.mxu0 0.0
  %242 = vmatpush1.xpose.msra.mxu0 %v169
  %243 = vmatprep.subr.mxu0 0.0
  %244 = vmatpush1.xpose.msra.mxu0 %v166
  %245 = vmatprep.subr.mxu0 0.0
  %246 = vmatpush2.xpose.msra.mxu0 0.0
  %247 = vmatprep.subr.mxu0 0.0
  %248 = vmatpush2.xpose.msra.mxu0 0.0
  %249 = vmatprep.subr.mxu0 0.0
  %250 = vmatpush2.xpose.msra.mxu0 0.0
  %251 = vmatprep.subr.mxu0 0.0
  %252 = vmatpush2.xpose.msra.mxu0 0.0
  %253 = vmatprep.subr.mxu0 0.0
  %254 = vmatpush2.xpose.msra.mxu0 0.0
  %255 = vmatprep.subr.mxu0 0.0
  %256 = vmatpush2.xpose.msra.mxu0 0.0
  %257 = vmatprep.subr.mxu0 0.0
  %258 = vmatpush2.xpose.msra.mxu0 0.0
  %259 = vmatprep.subr.mxu0 0.0
  %260 = vmatpush2.xpose.msra.mxu0 0.0
  %261 = vmatprep.subr.mxu0 0.0
  %262 = vmatpush2.xpose.msra.mxu0 0.0
  %263 = vmatprep.subr.mxu0 0.0
  %264 = vmatpush2.xpose.msra.mxu0 0.0
  %265 = vmatprep.subr.mxu0 0.0
  %266 = vmatpush2.xpose.msra.mxu0 0.0
  %267 = vmatprep.subr.mxu0 0.0
  %268 = vmatpush2.xpose.msra.mxu0 0.0
  %269 = vmatprep.subr.mxu0 0.0
  %270 = vmatpush2.xpose.msra.mxu0 0.0
  %271 = vmatprep.subr.mxu0 0.0
  %272 = vmatpush2.xpose.msra.mxu0 0.0
  %273 = vmatprep.subr.mxu0 0.0
  %274 = vmatpush2.xpose.msra.mxu0 0.0
  %275 = vmatprep.subr.mxu0 0.0
  %276 = vmatpush2.xpose.msra.mxu0 0.0
  %277 = vmatprep.mubr.f32.mxu0 0.0
  %278 = vmatmul.mubr.f32.gmra.mxu0 %v130
  %v279 = vpop.f32.mrf.mxu0
  %v280 = vadd.f32 %v71, %v279
  %v281 = vpop.f32.mrf.mxu0
  %282 = vmatprep.mubr.f32.mxu0 0.0
  %283 = vmatmul.mubr.f32.gmra.mxu0 %v133
  %v284 = vpop.f32.mrf.mxu0
  %v285 = vadd.f32 %v76, %v284
  %v286 = vpop.f32.mrf.mxu0
  %287 = vmatprep.mubr.f32.mxu0 0.0
  %288 = vmatmul.mubr.f32.gmra.mxu0 %v136
  %v289 = vpop.f32.mrf.mxu0
  %v290 = vadd.f32 %v81, %v289
  %v291 = vpop.f32.mrf.mxu0
  %292 = vmatprep.mubr.f32.mxu0 0.0
  %293 = vmatmul.mubr.f32.gmra.mxu0 %v139
  %v294 = vpop.f32.mrf.mxu0
  %v295 = vadd.f32 %v86, %v294
  %v296 = vpop.f32.mrf.mxu0
  %297 = vmatprep.mubr.f32.mxu0 0.0
  %298 = vmatmul.mubr.f32.gmra.mxu0 %v142
  %v299 = vpop.f32.mrf.mxu0
  %v300 = vadd.f32 %v91, %v299
  %v301 = vpop.f32.mrf.mxu0
  %302 = vmatprep.mubr.f32.mxu0 0.0
  %303 = vmatmul.mubr.f32.gmra.mxu0 %v145
  %v304 = vpop.f32.mrf.mxu0
  %v305 = vadd.f32 %v96, %v304
  %v306 = vpop.f32.mrf.mxu0
  %307 = vmatprep.mubr.f32.mxu0 0.0
  %308 = vmatmul.mubr.f32.gmra.mxu0 %v148
  %v309 = vpop.f32.mrf.mxu0
  %v310 = vadd.f32 %v101, %v309
  %v311 = vpop.f32.mrf.mxu0
  %312 = vmatprep.mubr.f32.mxu0 0.0
  %313 = vmatmul.mubr.f32.gmra.mxu0 %v151
  %v314 = vpop.f32.mrf.mxu0
  %v315 = vadd.f32 %v106, %v314
  %v316 = vpop.f32.mrf.mxu0
  %317 = vmatprep.mubr.f32.mxu0 0.0
  %318 = vmatmul.mubr.f32.gmra.mxu0 %v154
  %v319 = vpop.f32.mrf.mxu0
  %v320 = vadd.f32 %v111, %v319
  %v321 = vpop.f32.mrf.mxu0
  %322 = vmatprep.mubr.f32.mxu0 0.0
  %323 = vmatmul.mubr.f32.gmra.mxu0 %v157
  %v324 = vpop.f32.mrf.mxu0
  %v325 = vadd.f32 %v116, %v324
  %v326 = vpop.f32.mrf.mxu0
  %327 = vmatprep.mubr.f32.mxu0 0.0
  %328 = vmatmul.mubr.f32.gmra.mxu0 %v160
  %v329 = vpop.f32.mrf.mxu0
  %v330 = vadd.f32 %v121, %v329
  %v331 = vpop.f32.mrf.mxu0
  %332 = vmatprep.mubr.f32.mxu0 0.0
  %333 = vmatmul.mubr.f32.gmra.mxu0 %v163
  %v334 = vpop.f32.mrf.mxu0
  %v335 = vadd.f32 %v126, %v334
  %v336 = vpop.f32.mrf.mxu0
  %337 = vdwg.mxu0
  %v338 = vmul.f32 %v280, 0.5
  %v339 = vmul.f32 %v285, 0.5
  %v340 = vmul.f32 %v290, 0.5
  %v341 = vmul.f32 %v295, 0.5
  %v342 = vtanh.pop %v338
  %v343 = vtanh.pop %v339
  %v344 = vtanh.pop %v340
  %v345 = vtanh.pop %v341
  %v346 = vmul.f32 %v342, 0.5
  %v347 = vmul.f32 %v343, 0.5
  %v348 = vmul.f32 %v344, 0.5
  %v349 = vmul.f32 %v345, 0.5
  %v350 = vadd.f32 %v346, 0.5
  %v351 = vadd.f32 %v347, 0.5
  %v352 = vadd.f32 %v348, 0.5
  %v353 = vadd.f32 %v349, 0.5
  %v354 = vtanh.pop %v300
  %v355 = vtanh.pop %v305
  %v356 = vtanh.pop %v310
  %v357 = vtanh.pop %v315
  %v358 = vmul.f32 %v320, 0.5
  %v359 = vmul.f32 %v325, 0.5
  %v360 = vmul.f32 %v330, 0.5
  %v361 = vmul.f32 %v335, 0.5
  %v362 = vtanh.pop %v358
  %v363 = vtanh.pop %v359
  %v364 = vtanh.pop %v360
  %v365 = vtanh.pop %v361
  %v366 = vmul.f32 %v362, 0.5
  %v367 = vmul.f32 %v363, 0.5
  %v368 = vmul.f32 %v364, 0.5
  %v369 = vmul.f32 %v365, 0.5
  %v370 = vadd.f32 %v366, 0.5
  %v371 = vadd.f32 %v367, 0.5
  %v372 = vadd.f32 %v368, 0.5
  %v373 = vadd.f32 %v369, 0.5
  %v374 = vmul.f32 %v350, %v354
  %v375 = vmul.f32 %v351, %v355
  %v376 = vmul.f32 %v352, %v356
  %v377 = vmul.f32 %v353, %v357
  %v378 = vtanh.pop %v374
  %v379 = vtanh.pop %v375
  %v380 = vtanh.pop %v376
  %v381 = vtanh.pop %v377
  %v382 = vmul.f32 %v370, %v378
  %v383 = vmul.f32 %v371, %v379
  %v384 = vmul.f32 %v372, %v380
  %v385 = vmul.f32 %v373, %v381
  %v386 = vld [vmem:[%s3] sm:$0xff]
  %v387 = vld [vmem:[%s3 + $0x8] sm:$0xff]
  %v388 = vld [vmem:[%s3 + $0x10] sm:$0xff]
  %v389 = vld [vmem:[%s3 + $0x18] sm:$0xff]
  %v390 = vld [vmem:[%s3 + $0x20] sm:$0xff]
  %v391 = vld [vmem:[%s3 + $0x28] sm:$0xff]
  %v392 = vld [vmem:[%s3 + $0x30] sm:$0xff]
  %v393 = vld [vmem:[%s3 + $0x38] sm:$0xff]
  %v394 = vld [vmem:[%s3 + $0x40] sm:$0xff]
  %v395 = vld [vmem:[%s3 + $0x48] sm:$0xff]
  %v396 = vld [vmem:[%s3 + $0x50] sm:$0xff]
  %v397 = vld [vmem:[%s3 + $0x58] sm:$0xff]
  %v398 = vld [vmem:[%s4] sm:$0xff]
  %v399 = vld [vmem:[%s4 + $0x8] sm:$0xff]
  %v400 = vld [vmem:[%s4 + $0x10] sm:$0xff]
  %v401 = vld [vmem:[%s4 + $0x18] sm:$0xff]
  %v402 = vld [vmem:[%s4 + $0x20] sm:$0xff]
  %v403 = vld [vmem:[%s4 + $0x28] sm:$0xff]
  %v404 = vld [vmem:[%s4 + $0x30] sm:$0xff]
  %v405 = vld [vmem:[%s4 + $0x38] sm:$0xff]
  %v406 = vld [vmem:[%s4 + $0x40] sm:$0xff]
  %v407 = vld [vmem:[%s4 + $0x48] sm:$0xff]
  %v408 = vld [vmem:[%s4 + $0x50] sm:$0xff]
  %v409 = vld [vmem:[%s4 + $0x58] sm:$0xff]
  %411 = vset.pattern.permute.xlu0 0
  %412 = vperm.xlu0 %411, %v398
  %v413 = vpop.permute.xlu0 %412
  %416 = vset.pattern.permute.xlu0 0
  %417 = vperm.xlu0 %416, %v399
  %v418 = vpop.permute.xlu0 %417
  %421 = vset.pattern.permute.xlu0 0
  %422 = vperm.xlu0 %421, %v400
  %v423 = vpop.permute.xlu0 %422
  %426 = vset.pattern.permute.xlu0 0
  %427 = vperm.xlu0 %426, %v401
  %v428 = vpop.permute.xlu0 %427
  %431 = vset.pattern.permute.xlu0 0
  %432 = vperm.xlu0 %431, %v402
  %v433 = vpop.permute.xlu0 %432
  %436 = vset.pattern.permute.xlu0 0
  %437 = vperm.xlu0 %436, %v403
  %v438 = vpop.permute.xlu0 %437
  %441 = vset.pattern.permute.xlu0 0
  %442 = vperm.xlu0 %441, %v404
  %v443 = vpop.permute.xlu0 %442
  %446 = vset.pattern.permute.xlu0 0
  %447 = vperm.xlu0 %446, %v405
  %v448 = vpop.permute.xlu0 %447
  %451 = vset.pattern.permute.xlu0 0
  %452 = vperm.xlu0 %451, %v406
  %v453 = vpop.permute.xlu0 %452
  %456 = vset.pattern.permute.xlu0 0
  %457 = vperm.xlu0 %456, %v407
  %v458 = vpop.permute.xlu0 %457
  %461 = vset.pattern.permute.xlu0 0
  %462 = vperm.xlu0 %461, %v408
  %v463 = vpop.permute.xlu0 %462
  %466 = vset.pattern.permute.xlu0 0
  %467 = vperm.xlu0 %466, %v409
  %v468 = vpop.permute.xlu0 %467
  %vm470 = vcmask 261120
  %v472 = vsel %vm470, %v386, 0
  %v475 = vsel %vm470, %v387, 0
  %v478 = vsel %vm470, %v388, 0
  %v481 = vsel %vm470, %v389, 0
  %v484 = vsel %vm470, %v390, 0
  %v487 = vsel %vm470, %v391, 0
  %v490 = vsel %vm470, %v392, 0
  %v493 = vsel %vm470, %v393, 0
  %v496 = vsel %vm470, %v394, 0
  %v499 = vsel %vm470, %v395, 0
  %v502 = vsel %vm470, %v396, 0
  %v505 = vsel %vm470, %v397, 0
  %507 = vmatprep.subr.mxu0 0.0
  %508 = vmatpush1.msra.mxu0 0.0
  %509 = vmatprep.subr.mxu0 0.0
  %510 = vmatpush1.msra.mxu0 0.0
  %511 = vmatprep.subr.mxu0 0.0
  %512 = vmatpush1.msra.mxu0 0.0
  %513 = vmatprep.subr.mxu0 0.0
  %514 = vmatpush1.msra.mxu0 0.0
  %515 = vmatprep.subr.mxu0 0.0
  %516 = vmatpush1.msra.mxu0 0.0
  %517 = vmatprep.subr.mxu0 0.0
  %518 = vmatpush1.msra.mxu0 0.0
  %519 = vmatprep.subr.mxu0 0.0
  %520 = vmatpush1.msra.mxu0 0.0
  %521 = vmatprep.subr.mxu0 0.0
  %522 = vmatpush1.msra.mxu0 0.0
  %523 = vmatprep.subr.mxu0 0.0
  %524 = vmatpush1.msra.mxu0 0.0
  %525 = vmatprep.subr.mxu0 0.0
  %526 = vmatpush1.msra.mxu0 0.0
  %527 = vmatprep.subr.mxu0 0.0
  %528 = vmatpush1.msra.mxu0 0.0
  %529 = vmatprep.subr.mxu0 0.0
  %530 = vmatpush1.msra.mxu0 0.0
  %531 = vmatprep.subr.mxu0 0.0
  %532 = vmatpush1.msra.mxu0 %v385
  %533 = vmatprep.subr.mxu0 0.0
  %534 = vmatpush1.msra.mxu0 %v384
  %535 = vmatprep.subr.mxu0 0.0
  %536 = vmatpush1.msra.mxu0 %v383
  %537 = vmatprep.subr.mxu0 0.0
  %538 = vmatpush1.msra.mxu0 %v382
  %539 = vmatprep.subr.mxu0 0.0
  %540 = vmatpush2.msra.mxu0 0.0
  %541 = vmatprep.subr.mxu0 0.0
  %542 = vmatpush2.msra.mxu0 0.0
  %543 = vmatprep.subr.mxu0 0.0
  %544 = vmatpush2.msra.mxu0 0.0
  %545 = vmatprep.subr.mxu0 0.0
  %546 = vmatpush2.msra.mxu0 0.0
  %547 = vmatprep.subr.mxu0 0.0
  %548 = vmatpush2.msra.mxu0 0.0
  %549 = vmatprep.subr.mxu0 0.0
  %550 = vmatpush2.msra.mxu0 0.0
  %551 = vmatprep.subr.mxu0 0.0
  %552 = vmatpush2.msra.mxu0 0.0
  %553 = vmatprep.subr.mxu0 0.0
  %554 = vmatpush2.msra.mxu0 0.0
  %555 = vmatprep.subr.mxu0 0.0
  %556 = vmatpush2.msra.mxu0 0.0
  %557 = vmatprep.subr.mxu0 0.0
  %558 = vmatpush2.msra.mxu0 0.0
  %559 = vmatprep.subr.mxu0 0.0
  %560 = vmatpush2.msra.mxu0 0.0
  %561 = vmatprep.subr.mxu0 0.0
  %562 = vmatpush2.msra.mxu0 0.0
  %563 = vmatprep.subr.mxu0 0.0
  %564 = vmatpush2.msra.mxu0 0.0
  %565 = vmatprep.subr.mxu0 0.0
  %566 = vmatpush2.msra.mxu0 0.0
  %567 = vmatprep.subr.mxu0 0.0
  %568 = vmatpush2.msra.mxu0 0.0
  %569 = vmatprep.subr.mxu0 0.0
  %570 = vmatpush2.msra.mxu0 0.0
  %571 = vmatprep.mubr.f32.mxu0 0.0
  %572 = vmatmul.mubr.f32.gmra.mxu0 %v472
  %v573 = vpop.f32.mrf.mxu0
  %v574 = vadd.f32 %v413, %v573
  %v575 = vpop.f32.mrf.mxu0
  %576 = vmatprep.mubr.f32.mxu0 0.0
  %577 = vmatmul.mubr.f32.gmra.mxu0 %v475
  %v578 = vpop.f32.mrf.mxu0
  %v579 = vadd.f32 %v418, %v578
  %v580 = vpop.f32.mrf.mxu0
  %581 = vmatprep.mubr.f32.mxu0 0.0
  %582 = vmatmul.mubr.f32.gmra.mxu0 %v478
  %v583 = vpop.f32.mrf.mxu0
  %v584 = vadd.f32 %v423, %v583
  %v585 = vpop.f32.mrf.mxu0
  %586 = vmatprep.mubr.f32.mxu0 0.0
  %587 = vmatmul.mubr.f32.gmra.mxu0 %v481
  %v588 = vpop.f32.mrf.mxu0
  %v589 = vadd.f32 %v428, %v588
  %v590 = vpop.f32.mrf.mxu0
  %591 = vmatprep.mubr.f32.mxu0 0.0
  %592 = vmatmul.mubr.f32.gmra.mxu0 %v484
  %v593 = vpop.f32.mrf.mxu0
  %v594 = vadd.f32 %v433, %v593
  %v595 = vpop.f32.mrf.mxu0
  %596 = vmatprep.mubr.f32.mxu0 0.0
  %597 = vmatmul.mubr.f32.gmra.mxu0 %v487
  %v598 = vpop.f32.mrf.mxu0
  %v599 = vadd.f32 %v438, %v598
  %v600 = vpop.f32.mrf.mxu0
  %601 = vmatprep.mubr.f32.mxu0 0.0
  %602 = vmatmul.mubr.f32.gmra.mxu0 %v490
  %v603 = vpop.f32.mrf.mxu0
  %v604 = vadd.f32 %v443, %v603
  %v605 = vpop.f32.mrf.mxu0
  %606 = vmatprep.mubr.f32.mxu0 0.0
  %607 = vmatmul.mubr.f32.gmra.mxu0 %v493
  %v608 = vpop.f32.mrf.mxu0
  %v609 = vadd.f32 %v448, %v608
  %v610 = vpop.f32.mrf.mxu0
  %611 = vmatprep.mubr.f32.mxu0 0.0
  %612 = vmatmul.mubr.f32.gmra.mxu0 %v496
  %v613 = vpop.f32.mrf.mxu0
  %v614 = vadd.f32 %v453, %v613
  %v615 = vpop.f32.mrf.mxu0
  %616 = vmatprep.mubr.f32.mxu0 0.0
  %617 = vmatmul.mubr.f32.gmra.mxu0 %v499
  %v618 = vpop.f32.mrf.mxu0
  %v619 = vadd.f32 %v458, %v618
  %v620 = vpop.f32.mrf.mxu0
  %621 = vmatprep.mubr.f32.mxu0 0.0
  %622 = vmatmul.mubr.f32.gmra.mxu0 %v502
  %v623 = vpop.f32.mrf.mxu0
  %v624 = vadd.f32 %v463, %v623
  %v625 = vpop.f32.mrf.mxu0
  %626 = vmatprep.mubr.f32.mxu0 0.0
  %627 = vmatmul.mubr.f32.gmra.mxu0 %v505
  %v628 = vpop.f32.mrf.mxu0
  %v629 = vadd.f32 %v468, %v628
  %v630 = vpop.f32.mrf.mxu0
  %631 = vdwg.mxu0
  %v632 = vmul.f32 %v574, 0.5
  %v633 = vmul.f32 %v579, 0.5
  %v634 = vmul.f32 %v584, 0.5
  %v635 = vmul.f32 %v589, 0.5
  %v636 = vtanh.pop %v632
  %v637 = vtanh.pop %v633
  %v638 = vtanh.pop %v634
  %v639 = vtanh.pop %v635
  %v640 = vmul.f32 %v636, 0.5
  %v641 = vmul.f32 %v637, 0.5
  %v642 = vmul.f32 %v638, 0.5
  %v643 = vmul.f32 %v639, 0.5
  %v644 = vadd.f32 %v640, 0.5
  %v645 = vadd.f32 %v641, 0.5
  %v646 = vadd.f32 %v642, 0.5
  %v647 = vadd.f32 %v643, 0.5
  %v648 = vtanh.pop %v594
  %v649 = vtanh.pop %v599
  %v650 = vtanh.pop %v604
  %v651 = vtanh.pop %v609
  %v652 = vmul.f32 %v614, 0.5
  %v653 = vmul.f32 %v619, 0.5
  %v654 = vmul.f32 %v624, 0.5
  %v655 = vmul.f32 %v629, 0.5
  %v656 = vtanh.pop %v652
  %v657 = vtanh.pop %v653
  %v658 = vtanh.pop %v654
  %v659 = vtanh.pop %v655
  %v660 = vmul.f32 %v656, 0.5
  %v661 = vmul.f32 %v657, 0.5
  %v662 = vmul.f32 %v658, 0.5
  %v663 = vmul.f32 %v659, 0.5
  %v664 = vadd.f32 %v660, 0.5
  %v665 = vadd.f32 %v661, 0.5
  %v666 = vadd.f32 %v662, 0.5
  %v667 = vadd.f32 %v663, 0.5
  %v668 = vmul.f32 %v644, %v648
  %v669 = vmul.f32 %v645, %v649
  %v670 = vmul.f32 %v646, %v650
  %v671 = vmul.f32 %v647, %v651
  %v672 = vtanh.pop %v668
  %v673 = vtanh.pop %v669
  %v674 = vtanh.pop %v670
  %v675 = vtanh.pop %v671
  %v676 = vmul.f32 %v664, %v672
  %v677 = vmul.f32 %v665, %v673
  %v678 = vmul.f32 %v666, %v674
  %v679 = vmul.f32 %v667, %v675
  %v680 = vld [vmem:[%s5] sm:$0xff]
  %v681 = vld [vmem:[%s5 + $0x8] sm:$0xff]
  %v682 = vld [vmem:[%s5 + $0x10] sm:$0xff]
  %v683 = vld [vmem:[%s5 + $0x18] sm:$0xff]
  %685 = vset.pattern.permute.xlu0 0
  %686 = vperm.xlu0 %685, %v680
  %v687 = vpop.permute.xlu0 %686
  %690 = vset.pattern.permute.xlu0 0
  %691 = vperm.xlu0 %690, %v681
  %v692 = vpop.permute.xlu0 %691
  %695 = vset.pattern.permute.xlu0 0
  %696 = vperm.xlu0 %695, %v682
  %v697 = vpop.permute.xlu0 %696
  %700 = vset.pattern.permute.xlu0 0
  %701 = vperm.xlu0 %700, %v683
  %v702 = vpop.permute.xlu0 %701
  %v704 = vmul.f32 %v676, %v687
  %v705 = vmul.f32 %v677, %v692
  %v706 = vmul.f32 %v678, %v697
  %v707 = vmul.f32 %v679, %v702
  %v708 = vadd.f32 %v704, %v705
  %v709 = vadd.f32 %v708, %v706
  %v710 = vadd.f32 %v709, %v707
  %v711 = vrot.slane %v710, 4
  %v712 = vadd.f32 %v710, %v711
  %v713 = vrot.slane %v712, 2
  %v714 = vadd.f32 %v712, %v713
  %v715 = vrot.slane %v714, 1
  %v716 = vadd.f32 %v714, %v715
  %v717 = vld [vmem:[#allocation2] sm:$0x1]
  %719 = vset.pattern.permute.xlu0 0
  %720 = vperm.xlu0 %719, %v717
  %v721 = vpop.permute.xlu0 %720
  %v723 = vlaneseq
  %v724 = vshrl.u32 %v723, 7
  %v725 = vsub.s32 0, %v724
  %v726 = vrot.slane %v721, %v725
  %v727 = vadd.f32 %v716, %v726
  %728 = vst [vmem:[%s7] sm:$0x1] %v727
  // Predicated region
  $region30: #{lstm_forward.1} parent=0 // pred_check
    _
  $region31: #{lstm_forward.1} parent=0 // pred_check_branch
    %730 = sbr.rel (0) target = $region33
  $region32: #{lstm_forward.1} parent=0 // pred_region
    _
  $region33: #{lstm_forward.1} parent=0 // pred_fallthru
    _
  // Predicated region
  $region34: #{lstm_forward.1} parent=0 // pred_check
    _
  $region35: #{lstm_forward.1} parent=0 // pred_check_branch
    %732 = sbr.rel (0) target = $region37
  $region36: #{lstm_forward.1} parent=0 // pred_region
    _
  $region37: #{lstm_forward.1} parent=0 // pred_fallthru
    _

</llo_original>
